<compile_context>
chip_gen: v5e
topology: v5e:2x2
jax: 0.10.0
libtpu: 0.0.40
codegen_flags: <defaults>
</compile_context>

<pallas_src>
import functools

import jax
import jax.numpy as jnp
from jax.experimental import pallas as pl
from jax.experimental.pallas import tpu as pltpu


_NEG_BIG = -1e30  # f32 bias for padded output columns: exp underflows to exactly 0


def _round_up(x, m):
    return (x + m - 1) // m * m


def _policy_kernel(x_ref, w1_ref, b1_ref, w2_ref, b2_ref, w3_ref, b3_ref, o_ref):
    # Cast activations to bf16 in-kernel (no extra HBM pass in the wrapper).
    x = x_ref[...].astype(jnp.bfloat16)                                # [bb, D_in]

    # fc1 + relu: bias-add + relu fused into the bf16 cast so only one copy of
    # the [bb, H] intermediate stays live (less vld/vst pressure).
    h1 = jnp.dot(x, w1_ref[...], preferred_element_type=jnp.float32)   # [bb, H] f32
    h1 = jnp.maximum(h1 + b1_ref[...], 0.0).astype(jnp.bfloat16)

    # fc2 + relu
    h2 = jnp.dot(h1, w2_ref[...], preferred_element_type=jnp.float32)
    h2 = jnp.maximum(h2 + b2_ref[...], 0.0).astype(jnp.bfloat16)

    # fc3 (out-features pre-padded to 128 lanes; padded bias columns = -1e30, f32)
    logits = jnp.dot(h2, w3_ref[...], preferred_element_type=jnp.float32)
    logits = logits + b3_ref[...]

    # Numerically stable softmax in f32 over the padded last axis; padded
    # columns contribute exp(-huge) == 0, so this equals softmax over the real
    # columns.  Result stored bf16 (halves output writeback).
    m = jnp.max(logits, axis=-1, keepdims=True)
    e = jnp.exp(logits - m)
    denom = jnp.sum(e, axis=-1, keepdims=True)
    o_ref[...] = (e * pl.reciprocal(denom, approx=True)).astype(o_ref.dtype)


def prepare_policy_params(w1, b1, w2, b2, w3, b3):
    """One-time parameter prep (call at init, NOT per forward).

    Weights are [in, out] (transposed vs torch), biases are [1, out].
    Pads fc3 out-features to a multiple of 128 (lane-dense stores) and casts
    matmul operands to bf16.  Biases stay f32 so the -1e30 pad trick is exact.
    Returns (params_tuple, d_out)."""
    d_out = w3.shape[1]
    d_out_p = _round_up(d_out, 128)
    w3_p = jnp.pad(w3, ((0, 0), (0, d_out_p - d_out)))
    b3_p = jnp.pad(b3, ((0, 0), (0, d_out_p - d_out)), constant_values=_NEG_BIG)
    params = (
        w1.astype(jnp.bfloat16), b1.astype(jnp.float32),
        w2.astype(jnp.bfloat16), b2.astype(jnp.float32),
        w3_p.astype(jnp.bfloat16), b3_p.astype(jnp.float32),
    )
    return params, d_out


@functools.partial(jax.jit, static_argnames=("d_out", "block_b"))
def policy_network_forward(x, params, *, d_out, block_b=256):
    """x: [B, input_dim] f32; params from prepare_policy_params.
    Returns softmax probabilities [B, output_dim] f32."""
    w1, b1, w2, b2, w3, b3 = params
    B, d_in = x.shape
    hidden = w1.shape[1]
    d_out_p = w3.shape[1]

    # Batch tile: cap at block_b, but also at ceil(B/2) (rounded to a sublane
    # multiple of 8) so there are >= 2 grid steps whenever B > 8 -> the
    # "parallel" batch axis shards across v7x's two TensorCores.  Ragged last
    # blocks are masked by Pallas, so x is never padded.
    # (Sweep block_b in {256, 512, 1024} on single-TC v5e/v6e.)
    bb = min(block_b, _round_up(pl.cdiv(B, 2), 8))
    grid = (pl.cdiv(B, bb),)

    flops = 2 * B * (d_in * hidden + hidden * hidden + hidden * d_out_p)
    bytes_accessed = (
        B * d_in * 4                                    # x (f32)
        + (w1.size + w2.size + w3.size) * 2             # bf16 weights
        + (b1.size + b2.size + b3.size) * 4              # f32 biases
        + B * d_out_p * 2                                # bf16 output
    )

    out_p = pl.pallas_call(
        _policy_kernel,
        out_shape=jax.ShapeDtypeStruct((B, d_out_p), jnp.bfloat16),
        grid_spec=pltpu.PrefetchScalarGridSpec(
            num_scalar_prefetch=0,
            grid=grid,
            in_specs=[
                # batch tile of activations (f32, cast in-kernel)
                pl.BlockSpec((bb, d_in), lambda i: (i, 0)),
                # weights / biases: constant block index -> resident across grid
                pl.BlockSpec((d_in, hidden), lambda i: (0, 0)),
                pl.BlockSpec((1, hidden), lambda i: (0, 0)),
                pl.BlockSpec((hidden, hidden), lambda i: (0, 0)),
                pl.BlockSpec((1, hidden), lambda i: (0, 0)),
                pl.BlockSpec((hidden, d_out_p), lambda i: (0, 0)),
                pl.BlockSpec((1, d_out_p), lambda i: (0, 0)),
            ],
            out_specs=pl.BlockSpec((bb, d_out_p), lambda i: (i, 0)),
        ),
        compiler_params=pltpu.CompilerParams(
            # batch grid is independent -> megacore-shards across v7x's 2 TCs
            dimension_semantics=("parallel",),
        ),
        cost_estimate=pl.CostEstimate(
            flops=flops,
            transcendentals=B * d_out_p,
            bytes_accessed=bytes_accessed,
        ),
    )(x, w1, b1, w2, b2, w3, b3)

    # Drop the zero-probability padded columns; cast the tiny [B, d_out] result
    # back to f32 to match the PyTorch module's output dtype.
    return out_p[:, :d_out].astype(jnp.float32)


def _init_linear(key, fan_in, fan_out):
    """PyTorch-style Kaiming-uniform init, W stored as [fan_in, fan_out]."""
    kw, kb = jax.random.split(key)
    bound = 1.0 / jnp.sqrt(jnp.float32(fan_in))
    w = jax.random.uniform(kw, (fan_in, fan_out), jnp.float32, -bound, bound)
    b = jax.random.uniform(kb, (1, fan_out), jnp.float32, -bound, bound)
    return w, b


def _reference_forward_f32(x, w1, b1, w2, b2, w3, b3):
    """Pure-f32 reference: exact PyTorch forward semantics."""
    h1 = jnp.maximum(x @ w1 + b1, 0.0)
    h2 = jnp.maximum(h1 @ w2 + b2, 0.0)
    return jax.nn.softmax(h2 @ w3 + b3, axis=-1)


def _reference_forward_bf16(x, w1, b1, w2, b2, w3, b3):
    """Reference mirroring the kernel's numerics (bf16 matmuls, f32 accumulate)."""
    bf = jnp.bfloat16
    h1 = jnp.dot(x.astype(bf), w1.astype(bf), preferred_element_type=jnp.float32) + b1
    h1 = jnp.maximum(h1, 0.0)
    h2 = jnp.dot(h1.astype(bf), w2.astype(bf), preferred_element_type=jnp.float32) + b2
    h2 = jnp.maximum(h2, 0.0)
    logits = jnp.dot(h2.astype(bf), w3.astype(bf), preferred_element_type=jnp.float32) + b3
    return jax.nn.softmax(logits, axis=-1)


if __name__ == "__main__":
    # Small shapes consistent with the module: input_dim=32, hidden_dim=128, output_dim=8.
    D_IN, HIDDEN, D_OUT = 32, 128, 8

    key = jax.random.PRNGKey(0)
    kx, k1, k2, k3, kx2 = jax.random.split(key, 5)

    w1, b1 = _init_linear(k1, D_IN, HIDDEN)
    w2, b2 = _init_linear(k2, HIDDEN, HIDDEN)
    w3, b3 = _init_linear(k3, HIDDEN, D_OUT)

    # One-time weight prep (pad + bf16 cast), outside the hot path.
    params, d_out = prepare_policy_params(w1, b1, w2, b2, w3, b3)

    # --- case 1: tiny batch (single ragged block, masked sublane stores) -----
    B = 4
    x = jax.random.normal(kx, (B, D_IN), jnp.float32)
    out = jax.block_until_ready(policy_network_forward(x, params, d_out=d_out))
    assert out.shape == (B, D_OUT), out.shape
    assert bool(jnp.all(out >= 0.0))
    assert jnp.allclose(jnp.sum(out, axis=-1), 1.0, atol=2e-2)
    ref_bf = _reference_forward_bf16(x, w1, b1, w2, b2, w3, b3)
    ref_f32 = _reference_forward_f32(x, w1, b1, w2, b2, w3, b3)
    assert jnp.allclose(out, ref_bf, atol=1e-2), float(jnp.max(jnp.abs(out - ref_bf)))
    assert jnp.allclose(out, ref_f32, atol=3e-2), float(jnp.max(jnp.abs(out - ref_f32)))

    # --- case 2: ragged larger batch (2-step parallel grid: 152 + 148 rows) --
    B2 = 300
    x2 = jax.random.normal(kx2, (B2, D_IN), jnp.float32)
    out2 = jax.block_until_ready(policy_network_forward(x2, params, d_out=d_out))
    assert out2.shape == (B2, D_OUT), out2.shape
    assert jnp.allclose(jnp.sum(out2, axis=-1), 1.0, atol=2e-2)
    ref2_bf = _reference_forward_bf16(x2, w1, b1, w2, b2, w3, b3)
    assert jnp.allclose(out2, ref2_bf, atol=1e-2), float(jnp.max(jnp.abs(out2 - ref2_bf)))

    print("KERNEL_OK")
</pallas_src>

<mosaic_0001>
module attributes {stable_mosaic.version = 11 : i64} {
  func.func @_policy_kernel(%arg0: i32, %arg1: memref<8x32xf32, #tpu.memory_space<vmem>>, %arg2: memref<32x128xbf16, #tpu.memory_space<vmem>>, %arg3: memref<1x128xf32, #tpu.memory_space<vmem>>, %arg4: memref<128x128xbf16, #tpu.memory_space<vmem>>, %arg5: memref<1x128xf32, #tpu.memory_space<vmem>>, %arg6: memref<128x128xbf16, #tpu.memory_space<vmem>>, %arg7: memref<1x128xf32, #tpu.memory_space<vmem>>, %arg8: memref<8x128xbf16, #tpu.memory_space<vmem>>) attributes {dimension_semantics = [#tpu.dimension_semantics<parallel>], iteration_bounds = array<i64: 1>, scalar_prefetch = 0 : i64, scratch_operands = 0 : i64, tpu.core_type = #tpu.core_type<tc>, window_params = [{transform_indices = @transform_0, window_bounds = array<i64: 8, 32>}, {pipeline_mode = #tpu.pipeline_mode<synchronous>, transform_indices = @transform_1, window_bounds = array<i64: 32, 128>}, {pipeline_mode = #tpu.pipeline_mode<synchronous>, transform_indices = @transform_2, window_bounds = array<i64: 1, 128>}, {pipeline_mode = #tpu.pipeline_mode<synchronous>, transform_indices = @transform_3, window_bounds = array<i64: 128, 128>}, {pipeline_mode = #tpu.pipeline_mode<synchronous>, transform_indices = @transform_4, window_bounds = array<i64: 1, 128>}, {pipeline_mode = #tpu.pipeline_mode<synchronous>, transform_indices = @transform_5, window_bounds = array<i64: 128, 128>}, {pipeline_mode = #tpu.pipeline_mode<synchronous>, transform_indices = @transform_6, window_bounds = array<i64: 1, 128>}, {transform_indices = @transform_7, window_bounds = array<i64: 8, 128>}]} {
    %c0 = arith.constant 0 : index
    %c0_0 = arith.constant 0 : index
    %0 = vector.load %arg1[%c0, %c0_0] : memref<8x32xf32, #tpu.memory_space<vmem>>, vector<8x32xf32>
    %1 = arith.truncf %0 : vector<8x32xf32> to vector<8x32xbf16>
    %c0_1 = arith.constant 0 : index
    %c0_2 = arith.constant 0 : index
    %2 = vector.load %arg2[%c0_1, %c0_2] : memref<32x128xbf16, #tpu.memory_space<vmem>>, vector<32x128xbf16>
    %cst = arith.constant dense<0.000000e+00> : vector<8x128xf32>
    %3 = tpu.matmul %1, %2, %cst {dimension_numbers = #tpu.dot_dimension_numbers<[1], [0], [0], [1], [0, 0, 1, 1], [], []>} : vector<8x32xbf16>, vector<32x128xbf16>, vector<8x128xf32> -> vector<8x128xf32>
    %c0_3 = arith.constant 0 : index
    %c0_4 = arith.constant 0 : index
    %4 = vector.load %arg3[%c0_3, %c0_4] : memref<1x128xf32, #tpu.memory_space<vmem>>, vector<1x128xf32>
    %5 = vector.broadcast %4 : vector<1x128xf32> to vector<8x128xf32>
    %6 = arith.addf %3, %5 : vector<8x128xf32>
    %cst_5 = arith.constant 0.000000e+00 : f32
    %7 = vector.broadcast %cst_5 : f32 to vector<8x128xf32>
    %8 = arith.maximumf %6, %7 : vector<8x128xf32>
    %9 = arith.truncf %8 : vector<8x128xf32> to vector<8x128xbf16>
    %c0_6 = arith.constant 0 : index
    %c0_7 = arith.constant 0 : index
    %10 = vector.load %arg4[%c0_6, %c0_7] : memref<128x128xbf16, #tpu.memory_space<vmem>>, vector<128x128xbf16>
    %cst_8 = arith.constant dense<0.000000e+00> : vector<8x128xf32>
    %11 = tpu.matmul %9, %10, %cst_8 {dimension_numbers = #tpu.dot_dimension_numbers<[1], [0], [0], [1], [0, 0, 1, 1], [], []>} : vector<8x128xbf16>, vector<128x128xbf16>, vector<8x128xf32> -> vector<8x128xf32>
    %c0_9 = arith.constant 0 : index
    %c0_10 = arith.constant 0 : index
    %12 = vector.load %arg5[%c0_9, %c0_10] : memref<1x128xf32, #tpu.memory_space<vmem>>, vector<1x128xf32>
    %13 = vector.broadcast %12 : vector<1x128xf32> to vector<8x128xf32>
    %14 = arith.addf %11, %13 : vector<8x128xf32>
    %cst_11 = arith.constant 0.000000e+00 : f32
    %15 = vector.broadcast %cst_11 : f32 to vector<8x128xf32>
    %16 = arith.maximumf %14, %15 : vector<8x128xf32>
    %17 = arith.truncf %16 : vector<8x128xf32> to vector<8x128xbf16>
    %c0_12 = arith.constant 0 : index
    %c0_13 = arith.constant 0 : index
    %18 = vector.load %arg6[%c0_12, %c0_13] : memref<128x128xbf16, #tpu.memory_space<vmem>>, vector<128x128xbf16>
    %cst_14 = arith.constant dense<0.000000e+00> : vector<8x128xf32>
    %19 = tpu.matmul %17, %18, %cst_14 {dimension_numbers = #tpu.dot_dimension_numbers<[1], [0], [0], [1], [0, 0, 1, 1], [], []>} : vector<8x128xbf16>, vector<128x128xbf16>, vector<8x128xf32> -> vector<8x128xf32>
    %c0_15 = arith.constant 0 : index
    %c0_16 = arith.constant 0 : index
    %20 = vector.load %arg7[%c0_15, %c0_16] : memref<1x128xf32, #tpu.memory_space<vmem>>, vector<1x128xf32>
    %21 = vector.broadcast %20 : vector<1x128xf32> to vector<8x128xf32>
    %22 = arith.addf %19, %21 : vector<8x128xf32>
    %cst_17 = arith.constant dense<0xFF800000> : vector<8xf32>
    %23 = vector.multi_reduction <maximumf>, %22, %cst_17 [1] : vector<8x128xf32> to vector<8xf32>
    %24 = vector.shape_cast %23 : vector<8xf32> to vector<8x1xf32>
    %25 = vector.broadcast %24 : vector<8x1xf32> to vector<8x128xf32>
    %26 = arith.subf %22, %25 : vector<8x128xf32>
    %27 = math.exp %26 : vector<8x128xf32>
    %cst_18 = arith.constant dense<0.000000e+00> : vector<8xf32>
    %28 = vector.multi_reduction <add>, %27, %cst_18 [1] : vector<8x128xf32> to vector<8xf32>
    %29 = vector.shape_cast %28 : vector<8xf32> to vector<8x1xf32>
    %30 = tpu.reciprocal %29 {approx = true} : vector<8x1xf32> -> vector<8x1xf32>
    %31 = vector.broadcast %30 : vector<8x1xf32> to vector<8x128xf32>
    %32 = arith.mulf %27, %31 : vector<8x128xf32>
    %33 = arith.truncf %32 : vector<8x128xf32> to vector<8x128xbf16>
    %c0_19 = arith.constant 0 : index
    %c0_20 = arith.constant 0 : index
    %34 = vector.load %arg8[%c0_19, %c0_20] : memref<8x128xbf16, #tpu.memory_space<vmem>>, vector<8x128xbf16>
    tpu.vector_store %arg8[%c0_19, %c0_20], %33 {strides = array<i32>} : memref<8x128xbf16, #tpu.memory_space<vmem>>, vector<8x128xbf16>,
    return
  }
  func.func @transform_0(%arg0: i32) -> (i32, i32) {
    %c0_i32 = arith.constant 0 : i32
    %c0_i32_0 = arith.constant 0 : i32
    return %arg0, %c0_i32 : i32, i32
  }
  func.func @transform_1(%arg0: i32) -> (i32, i32) {
    %c0_i32 = arith.constant 0 : i32
    %c0_i32_0 = arith.constant 0 : i32
    %c0_i32_1 = arith.constant 0 : i32
    return %c0_i32, %c0_i32_0 : i32, i32
  }
  func.func @transform_2(%arg0: i32) -> (i32, i32) {
    %c0_i32 = arith.constant 0 : i32
    %c0_i32_0 = arith.constant 0 : i32
    %c0_i32_1 = arith.constant 0 : i32
    return %c0_i32, %c0_i32_0 : i32, i32
  }
  func.func @transform_3(%arg0: i32) -> (i32, i32) {
    %c0_i32 = arith.constant 0 : i32
    %c0_i32_0 = arith.constant 0 : i32
    %c0_i32_1 = arith.constant 0 : i32
    return %c0_i32, %c0_i32_0 : i32, i32
  }
  func.func @transform_4(%arg0: i32) -> (i32, i32) {
    %c0_i32 = arith.constant 0 : i32
    %c0_i32_0 = arith.constant 0 : i32
    %c0_i32_1 = arith.constant 0 : i32
    return %c0_i32, %c0_i32_0 : i32, i32
  }
  func.func @transform_5(%arg0: i32) -> (i32, i32) {
    %c0_i32 = arith.constant 0 : i32
    %c0_i32_0 = arith.constant 0 : i32
    %c0_i32_1 = arith.constant 0 : i32
    return %c0_i32, %c0_i32_0 : i32, i32
  }
  func.func @transform_6(%arg0: i32) -> (i32, i32) {
    %c0_i32 = arith.constant 0 : i32
    %c0_i32_0 = arith.constant 0 : i32
    %c0_i32_1 = arith.constant 0 : i32
    return %c0_i32, %c0_i32_0 : i32, i32
  }
  func.func @transform_7(%arg0: i32) -> (i32, i32) {
    %c0_i32 = arith.constant 0 : i32
    %c0_i32_0 = arith.constant 0 : i32
    return %arg0, %c0_i32 : i32, i32
  }
}

</mosaic_0001>

<llo_original>
// kernel: policy_network_forward.1
$region0: #{policy_network_forward.1}
  #allocation0 [shape = 'u32[]', space=smem, size = 0x4, offset = 0x4, fixed_abs, tag = 'smem constant byte address 0x4 - core index']
  #allocation1 [shape = 'u32[72,128]{1,0:T(1,128)}', space=vmem, size = 0x9000, scoped, tag = 'internal scratch']
  %s0 = inlined_call_operand.hbm [shape: f32[4,32], index: 0, kind: input, shape index: {}]
  %s1 = inlined_call_operand.hbm [shape: bf16[32,128], index: 1, kind: input, shape index: {}]
  %s2 = inlined_call_operand.vmem [shape: f32[1,128], index: 2, kind: input, shape index: {}]
  %s3 = inlined_call_operand.hbm [shape: bf16[128,128], index: 3, kind: input, shape index: {}]
  %s4 = inlined_call_operand.vmem [shape: f32[1,128], index: 4, kind: input, shape index: {}]
  %s5 = inlined_call_operand.hbm [shape: bf16[128,128], index: 5, kind: input, shape index: {}]
  %s6 = inlined_call_operand.vmem [shape: f32[1,128], index: 6, kind: input, shape index: {}]
  %s7 = inlined_call_operand.vmem [shape: bf16[4,128], index: 7, kind: output, shape index: {}]
  %s8 = sld [smem:[#allocation0]]
  $region84: #{policy_network_forward.1} parent=0
    _
  %s10 = ssub.s32 1, %s8
  %s11 = scalar_select 0, %s10, %s8
  $region1: #{policy_network_forward.1} parent=0
    #allocation2 [shape = 'u8[4096]{0}', space=vmem, size = 0x1000, scoped, tag = 'input window, operand 0, single buffered']
    #allocation3 [shape = 's32[1]{0}', space=sflag, size = 0x4, scoped, tag = 'scoped memory for policy_network_forward.1']
    #allocation4 [shape = 'u8[8192]{0}', space=vmem, size = 0x2000, scoped, tag = 'input window, operand 1, single buffered']
    #allocation5 [shape = 's32[1]{0}', space=sflag, size = 0x4, scoped, tag = 'scoped memory for policy_network_forward.1']
    #allocation6 [shape = 'u8[32768]{0}', space=vmem, size = 0x8000, scoped, tag = 'input window, operand 3, single buffered']
    #allocation7 [shape = 'u8[32768]{0}', space=vmem, size = 0x8000, scoped, tag = 'input window, operand 5, single buffered']
    #allocation8 [shape = 's32[1]{0}', space=sflag, size = 0x4, scoped, tag = 'scoped memory for policy_network_forward.1']
    #allocation9 [shape = 'u8[2048]{0}', space=vmem, size = 0x800, scoped, tag = 'output window, operand 0, single buffered']
    %12 = vsyncpa [#allocation3], 0
    %13 = vsyncpa [#allocation5], 0
    %14 = vsyncpa [#allocation8], 0
    // Predicated region
    $region2: #{policy_network_forward.1} parent=1 // pred_check
      _
    $region3: #{policy_network_forward.1} parent=1 // pred_check_branch
      %16 = sbr.rel (0) target = $region5
    $region4: #{policy_network_forward.1} parent=1 // pred_region
      %18 = vsyncadd [#allocation3], 64
      %s19 = sshll.u32 %s0, 4
      %s20 = int_to_ptr.hbm [resolvable:$true] %s19
      %s21 = sshll.u32 [#allocation2], 4
      %s22 = int_to_ptr.vmem [resolvable:$true] %s21
      %27 = dma.hbm_to_vmem [thread:$0]  %s20, 64, %s22, [#allocation3], 64, 64, 4
    $region5: #{policy_network_forward.1} parent=1 // pred_fallthru
      _
    // Predicated region
    $region6: #{policy_network_forward.1} parent=1 // pred_check
      _
    $region7: #{policy_network_forward.1} parent=1 // pred_check_branch
      %29 = sbr.rel (0) target = $region9
    $region8: #{policy_network_forward.1} parent=1 // pred_region
      %31 = vsyncadd [#allocation5], 0
      %s32 = sshll.u32 %s1, 4
      %s33 = int_to_ptr.hbm [resolvable:$true] %s32
      %s34 = sshll.u32 [#allocation4], 4
      %s35 = int_to_ptr.vmem [resolvable:$true] %s34
      %40 = dma.hbm_to_vmem [thread:$0]  %s33, 256, %s35, [#allocation5], 64, 64, 4
    $region9: #{policy_network_forward.1} parent=1 // pred_fallthru
      _
    // Predicated region
    $region10: #{policy_network_forward.1} parent=1 // pred_check
      _
    $region11: #{policy_network_forward.1} parent=1 // pred_check_branch
      %42 = sbr.rel (0) target = $region13
    $region12: #{policy_network_forward.1} parent=1 // pred_region
      _
    $region13: #{policy_network_forward.1} parent=1 // pred_fallthru
      _
    // Predicated region
    $region14: #{policy_network_forward.1} parent=1 // pred_check
      _
    $region15: #{policy_network_forward.1} parent=1 // pred_check_branch
      %44 = sbr.rel (0) target = $region17
    $region16: #{policy_network_forward.1} parent=1 // pred_region
      %46 = vsyncadd [#allocation5], 0
      %s47 = sshll.u32 %s3, 4
      %s48 = int_to_ptr.hbm [resolvable:$true] %s47
      %s49 = sshll.u32 [#allocation6], 4
      %s50 = int_to_ptr.vmem [resolvable:$true] %s49
      %55 = dma.hbm_to_vmem [thread:$0]  %s48, 1024, %s50, [#allocation5], 64, 64, 4
    $region17: #{policy_network_forward.1} parent=1 // pred_fallthru
      _
    // Predicated region
    $region18: #{policy_network_forward.1} parent=1 // pred_check
      _
    $region19: #{policy_network_forward.1} parent=1 // pred_check_branch
      %57 = sbr.rel (0) target = $region21
    $region20: #{policy_network_forward.1} parent=1 // pred_region
      _
    $region21: #{policy_network_forward.1} parent=1 // pred_fallthru
      _
    // Predicated region
    $region22: #{policy_network_forward.1} parent=1 // pred_check
      _
    $region23: #{policy_network_forward.1} parent=1 // pred_check_branch
      %59 = sbr.rel (0) target = $region25
    $region24: #{policy_network_forward.1} parent=1 // pred_region
      %61 = vsyncadd [#allocation8], 0
      %s62 = sshll.u32 %s5, 4
      %s63 = int_to_ptr.hbm [resolvable:$true] %s62
      %s64 = sshll.u32 [#allocation7], 4
      %s65 = int_to_ptr.vmem [resolvable:$true] %s64
      %70 = dma.hbm_to_vmem [thread:$0]  %s63, 1024, %s65, [#allocation8], 64, 64, 4
    $region25: #{policy_network_forward.1} parent=1 // pred_fallthru
      _
    // Predicated region
    $region26: #{policy_network_forward.1} parent=1 // pred_check
      _
    $region27: #{policy_network_forward.1} parent=1 // pred_check_branch
      %72 = sbr.rel (0) target = $region29
    $region28: #{policy_network_forward.1} parent=1 // pred_region
      _
    $region29: #{policy_network_forward.1} parent=1 // pred_fallthru
      _
    // Predicated region
    $region30: #{policy_network_forward.1} parent=1 // pred_check
      _
    $region31: #{policy_network_forward.1} parent=1 // pred_check_branch
      %74 = sbr.rel (0) target = $region33
    $region32: #{policy_network_forward.1} parent=1 // pred_region
      %76 = dma.done [#allocation3], 128
    $region33: #{policy_network_forward.1} parent=1 // pred_fallthru
      _
    // Predicated region
    $region34: #{policy_network_forward.1} parent=1 // pred_check
      _
    $region35: #{policy_network_forward.1} parent=1 // pred_check_branch
      %78 = sbr.rel (0) target = $region37
    $region36: #{policy_network_forward.1} parent=1 // pred_region
      %80 = dma.done [#allocation5], 256
    $region37: #{policy_network_forward.1} parent=1 // pred_fallthru
      _
    // Predicated region
    $region38: #{policy_network_forward.1} parent=1 // pred_check
      _
    $region39: #{policy_network_forward.1} parent=1 // pred_check_branch
      %82 = sbr.rel (0) target = $region41
    $region40: #{policy_network_forward.1} parent=1 // pred_region
      %84 = dma.done [#allocation5], 1024
    $region41: #{policy_network_forward.1} parent=1 // pred_fallthru
      _
    // Predicated region
    $region42: #{policy_network_forward.1} parent=1 // pred_check
      _
    $region43: #{policy_network_forward.1} parent=1 // pred_check_branch
      %86 = sbr.rel (0) target = $region45
    $region44: #{policy_network_forward.1} parent=1 // pred_region
      %88 = dma.done [#allocation8], 1024
    $region45: #{policy_network_forward.1} parent=1 // pred_fallthru
      _
    %v90 = vld [vmem:[#allocation2] sm:$0xff]
    %v91 = vpack.c.bf16 %v90, %v90
    %v92 = vld [vmem:[#allocation4] sm:$0xf]
    %v93 = vld [vmem:[#allocation4 + $0x4] sm:$0xf]
    %v94 = vld [vmem:[#allocation4 + $0x8] sm:$0xf]
    %v95 = vld [vmem:[#allocation4 + $0xc] sm:$0xf]
    %v96 = vld [vmem:[%s2] sm:$0x1]
    %v98 = vperm.slane %v96, 0
    %v104 = vunpack.c.l.b16 %v92
    %v105 = vunpack.c.l.b16 %v93
    %v106 = vunpack.c.l.b16 %v94
    %v107 = vunpack.c.l.b16 %v95
    %v108 = vpack.c.b16 %v105, %v104
    %v109 = vpack.c.b16 %v107, %v106
    %vm112 = vcmask 261120
    %v114 = vsel %vm112, %v91, 0
    %116 = vmatpush.bf16.msra.mxu0 0
    %117 = vmatpush.bf16.msra.mxu0 0
    %118 = vmatpush.bf16.msra.mxu0 0
    %119 = vmatpush.bf16.msra.mxu0 0
    %120 = vmatpush.bf16.msra.mxu0 0
    %121 = vmatpush.bf16.msra.mxu0 0
    %122 = vmatpush.bf16.msra.mxu0 %v109
    %123 = vmatpush.bf16.msra.mxu0 %v108
    %124 = vmatmul.bf16.gmra.mxu0 %v114
    %v125 = vpop.f32.mrf.mxu0
    %v126 = vadd.f32 %v98, %v125
    %v127 = vpop.f32.mrf.mxu0
    %128 = vdwg.mxu0
    %v129 = vmax.f32 %v126, 0.0
    %v130 = vpack.c.bf16 %v129, %v129
    %v131 = vld [vmem:[#allocation6] sm:$0xf]
    %v132 = vld [vmem:[#allocation6 + $0x4] sm:$0xf]
    %v133 = vld [vmem:[#allocation6 + $0x8] sm:$0xf]
    %v134 = vld [vmem:[#allocation6 + $0xc] sm:$0xf]
    %v135 = vld [vmem:[#allocation6 + $0x10] sm:$0xf]
    %v136 = vld [vmem:[#allocation6 + $0x14] sm:$0xf]
    %v137 = vld [vmem:[#allocation6 + $0x18] sm:$0xf]
    %v138 = vld [vmem:[#allocation6 + $0x1c] sm:$0xf]
    %v139 = vld [vmem:[#allocation6 + $0x20] sm:$0xf]
    %v140 = vld [vmem:[#allocation6 + $0x24] sm:$0xf]
    %v141 = vld [vmem:[#allocation6 + $0x28] sm:$0xf]
    %v142 = vld [vmem:[#allocation6 + $0x2c] sm:$0xf]
    %v143 = vld [vmem:[#allocation6 + $0x30] sm:$0xf]
    %v144 = vld [vmem:[#allocation6 + $0x34] sm:$0xf]
    %v145 = vld [vmem:[#allocation6 + $0x38] sm:$0xf]
    %v146 = vld [vmem:[#allocation6 + $0x3c] sm:$0xf]
    %v147 = vld [vmem:[%s4] sm:$0x1]
    %v149 = vperm.slane %v147, 0
    %v167 = vunpack.c.l.b16 %v131
    %v168 = vunpack.c.l.b16 %v132
    %v169 = vunpack.c.l.b16 %v133
    %v170 = vunpack.c.l.b16 %v134
    %v171 = vunpack.c.l.b16 %v135
    %v172 = vunpack.c.l.b16 %v136
    %v173 = vunpack.c.l.b16 %v137
    %v174 = vunpack.c.l.b16 %v138
    %v175 = vunpack.c.l.b16 %v139
    %v176 = vunpack.c.l.b16 %v140
    %v177 = vunpack.c.l.b16 %v141
    %v178 = vunpack.c.l.b16 %v142
    %v179 = vunpack.c.l.b16 %v143
    %v180 = vunpack.c.l.b16 %v144
    %v181 = vunpack.c.l.b16 %v145
    %v182 = vunpack.c.l.b16 %v146
    %v183 = vpack.c.b16 %v168, %v167
    %v184 = vpack.c.b16 %v170, %v169
    %v185 = vpack.c.b16 %v172, %v171
    %v186 = vpack.c.b16 %v174, %v173
    %v187 = vpack.c.b16 %v176, %v175
    %v188 = vpack.c.b16 %v178, %v177
    %v189 = vpack.c.b16 %v180, %v179
    %v190 = vpack.c.b16 %v182, %v181
    %199 = vmatpush.bf16.msra.mxu0 %v190
    %200 = vmatpush.bf16.msra.mxu0 %v189
    %201 = vmatpush.bf16.msra.mxu0 %v188
    %202 = vmatpush.bf16.msra.mxu0 %v187
    %203 = vmatpush.bf16.msra.mxu0 %v186
    %204 = vmatpush.bf16.msra.mxu0 %v185
    %205 = vmatpush.bf16.msra.mxu0 %v184
    %206 = vmatpush.bf16.msra.mxu0 %v183
    %207 = vmatmul.bf16.gmra.mxu0 %v130
    %v208 = vpop.f32.mrf.mxu0
    %v209 = vadd.f32 %v149, %v208
    %v210 = vpop.f32.mrf.mxu0
    %211 = vdwg.mxu0
    %v212 = vmax.f32 %v209, 0.0
    %v213 = vpack.c.bf16 %v212, %v212
    %v214 = vld [vmem:[#allocation7] sm:$0xf]
    %v215 = vld [vmem:[#allocation7 + $0x4] sm:$0xf]
    %v216 = vld [vmem:[#allocation7 + $0x8] sm:$0xf]
    %v217 = vld [vmem:[#allocation7 + $0xc] sm:$0xf]
    %v218 = vld [vmem:[#allocation7 + $0x10] sm:$0xf]
    %v219 = vld [vmem:[#allocation7 + $0x14] sm:$0xf]
    %v220 = vld [vmem:[#allocation7 + $0x18] sm:$0xf]
    %v221 = vld [vmem:[#allocation7 + $0x1c] sm:$0xf]
    %v222 = vld [vmem:[#allocation7 + $0x20] sm:$0xf]
    %v223 = vld [vmem:[#allocation7 + $0x24] sm:$0xf]
    %v224 = vld [vmem:[#allocation7 + $0x28] sm:$0xf]
    %v225 = vld [vmem:[#allocation7 + $0x2c] sm:$0xf]
    %v226 = vld [vmem:[#allocation7 + $0x30] sm:$0xf]
    %v227 = vld [vmem:[#allocation7 + $0x34] sm:$0xf]
    %v228 = vld [vmem:[#allocation7 + $0x38] sm:$0xf]
    %v229 = vld [vmem:[#allocation7 + $0x3c] sm:$0xf]
    %v230 = vld [vmem:[%s6] sm:$0x1]
    %v232 = vperm.slane %v230, 0
    %v250 = vunpack.c.l.b16 %v214
    %v251 = vunpack.c.l.b16 %v215
    %v252 = vunpack.c.l.b16 %v216
    %v253 = vunpack.c.l.b16 %v217
    %v254 = vunpack.c.l.b16 %v218
    %v255 = vunpack.c.l.b16 %v219
    %v256 = vunpack.c.l.b16 %v220
    %v257 = vunpack.c.l.b16 %v221
    %v258 = vunpack.c.l.b16 %v222
    %v259 = vunpack.c.l.b16 %v223
    %v260 = vunpack.c.l.b16 %v224
    %v261 = vunpack.c.l.b16 %v225
    %v262 = vunpack.c.l.b16 %v226
    %v263 = vunpack.c.l.b16 %v227
    %v264 = vunpack.c.l.b16 %v228
    %v265 = vunpack.c.l.b16 %v229
    %v266 = vpack.c.b16 %v251, %v250
    %v267 = vpack.c.b16 %v253, %v252
    %v268 = vpack.c.b16 %v255, %v254
    %v269 = vpack.c.b16 %v257, %v256
    %v270 = vpack.c.b16 %v259, %v258
    %v271 = vpack.c.b16 %v261, %v260
    %v272 = vpack.c.b16 %v263, %v262
    %v273 = vpack.c.b16 %v265, %v264
    %282 = vmatpush.bf16.msra.mxu0 %v273
    %283 = vmatpush.bf16.msra.mxu0 %v272
    %284 = vmatpush.bf16.msra.mxu0 %v271
    %285 = vmatpush.bf16.msra.mxu0 %v270
    %286 = vmatpush.bf16.msra.mxu0 %v269
    %287 = vmatpush.bf16.msra.mxu0 %v268
    %288 = vmatpush.bf16.msra.mxu0 %v267
    %289 = vmatpush.bf16.msra.mxu0 %v266
    %290 = vmatmul.bf16.gmra.mxu0 %v213
    %v291 = vpop.f32.mrf.mxu0
    %v292 = vadd.f32 %v232, %v291
    %v293 = vpop.f32.mrf.mxu0
    %294 = vdwg.mxu0
    %295 = vmax.xlane.f32.xlu0 %v292
    %v296 = vpop.xlane.xlu0 %295
    %v297 = vsub.f32 %v292, %v296
    %v298 = vmul.f32 %v297, 1.442695
    %v299 = vpow.pop %v298
    %300 = vadd.xlane.f32.xlu0 %v299
    %v301 = vpop.xlane.xlu0 %300
    %v302 = vrcp.pop %v301
    %v303 = vmul.f32 %v299, %v302
    %v304 = vpack.c.bf16 %v303, %v303
    %v306 = vrot.slane %v304, 2
    %vm307 = vcmask 1041408
    %v310 = vsel %vm307, %v304, %v306
    %vm311 = vcmask 1043458
    %v312 = vsel %vm311, %v304, %v306
    %v314 = vrot.slane %v312, 2
    %317 = vst [vmem:[#allocation9] sm:$0x3] %v310
    %318 = vst [vmem:[#allocation9 + $0x2] sm:$0x3] %v314
    // Predicated region
    $region46: #{policy_network_forward.1} parent=1 // pred_check
      _
    $region47: #{policy_network_forward.1} parent=1 // pred_check_branch
      %320 = sbr.rel (0) target = $region49
    $region48: #{policy_network_forward.1} parent=1 // pred_region
      // Predicated region
      $region50: #{policy_network_forward.1} parent=48 // pred_check
        _
      $region51: #{policy_network_forward.1} parent=48 // pred_check_branch
        %322 = sbr.rel (0) target = $region53
      $region52: #{policy_network_forward.1} parent=48 // pred_region
        // Predicated region
        $region54: #{policy_network_forward.1} parent=52 // pred_check
          _
        $region55: #{policy_network_forward.1} parent=52 // pred_check_branch
          %324 = sbr.rel target = $region57
        $region56: #{policy_network_forward.1} parent=52 // pred_region
          // Predicated region
          $region69: #{policy_network_forward.1} parent=56 // pred_check
            _
          $region70: #{policy_network_forward.1} parent=56 // pred_check_branch
            %340 = sbr.rel (0) target = $region72
          $region71: #{policy_network_forward.1} parent=56 // pred_region
            %s342 = ssub.s32 4, 1
            loop: start=0, step=1, limit=1
            $region73: #{policy_network_forward.1} parent=71 // loop_pre_header
              _
            $region74: #{policy_network_forward.1} parent=71 // loop_header
              %s344 = sphi 0, %s348
              %p345 = scmp.ge.s32.totalorder %s344, 1
              %s349 = sphi [#allocation9], [#allocation9]
              %s350 = sphi %s7, %s7
            $region75: #{policy_network_forward.1} parent=71 // loop_header_branch
              %347 = sbr.rel (%p345) target = $region79
            $region76: #{policy_network_forward.1} parent=71 // loop_body
              %v351 = vld [vmem:[%s349] sm:%s342]
              %352 = vst [vmem:[%s350] sm:%s342] %v351
            $region77: #{policy_network_forward.1} parent=71 // loop_footer
              %s348 = sadd.s32 1, %s344
            $region78: #{policy_network_forward.1} parent=71 // loop_footer_branch
              %343 = sbr.rel target = $region74
            $region79: #{policy_network_forward.1} parent=71 // loop_exit
              _
          $region72: #{policy_network_forward.1} parent=56 // pred_fallthru
            _
        $region57: #{policy_network_forward.1} parent=52 // pred_fallthru
          _
        // Predicated region
        $region58: #{policy_network_forward.1} parent=52 // pred_check
          _
        $region59: #{policy_network_forward.1} parent=52 // pred_check_branch
          %326 = sbr.rel (0) target = $region61
        $region60: #{policy_network_forward.1} parent=52 // pred_region
          %s328 = ssub.s32 4, 1
          loop: start=0, step=1, limit=1
          $region62: #{policy_network_forward.1} parent=60 // loop_pre_header
            _
          $region63: #{policy_network_forward.1} parent=60 // loop_header
            %s330 = sphi 0, %s334
            %p331 = scmp.ge.s32.totalorder %s330, 1
            %s335 = sphi [#allocation9], [#allocation9]
            %s336 = sphi %s7, %s7
          $region64: #{policy_network_forward.1} parent=60 // loop_header_branch
            %333 = sbr.rel (%p331) target = $region68
          $region65: #{policy_network_forward.1} parent=60 // loop_body
            %v337 = vld [vmem:[%s335] sm:%s328]
            %338 = vst [vmem:[%s336] sm:%s328] %v337
          $region66: #{policy_network_forward.1} parent=60 // loop_footer
            %s334 = sadd.s32 1, %s330
          $region67: #{policy_network_forward.1} parent=60 // loop_footer_branch
            %329 = sbr.rel target = $region63
          $region68: #{policy_network_forward.1} parent=60 // loop_exit
            _
        $region61: #{policy_network_forward.1} parent=52 // pred_fallthru
          _
      $region53: #{policy_network_forward.1} parent=48 // pred_fallthru
        _
      %353 = vnop
    $region49: #{policy_network_forward.1} parent=1 // pred_fallthru
      _
    // Predicated region
    $region80: #{policy_network_forward.1} parent=1 // pred_check
      _
    $region81: #{policy_network_forward.1} parent=1 // pred_check_branch
      %355 = sbr.rel (0) target = $region83
    $region82: #{policy_network_forward.1} parent=1 // pred_region
      _
    $region83: #{policy_network_forward.1} parent=1 // pred_fallthru
      _
    %356 = vsyncpa [#allocation3], 1
    %357 = vsyncpa [#allocation5], 1
    %358 = vsyncpa [#allocation8], 1

</llo_original>
